<compile_context>
chip_gen: v7x
topology: tpu7x:2x2x1
jax: 0.10.0
libtpu: 0.0.40
codegen_flags: <defaults>
</compile_context>

<pallas_src>
import functools

import jax
import jax.numpy as jnp
from jax.experimental import pallas as pl
from jax.experimental.pallas import tpu as pltpu


def _round_up(v, m):
    return (v + m - 1) // m * m


def _feature_pad(d):
    # Lane-dense (>=128). For dims > 256 pad to 256-multiples so the 2x256^2
    # MXUs on v6e/v7x see full passes (v5e's 4x128^2 is native at 128).
    return _round_up(d, 128) if d <= 256 else _round_up(d, 256)


def _pick_tm(n, tm_max=512, min_steps=8):
    # Large tiles amortize per-step overhead and approach the HBM roofline,
    # but keep >= min_steps grid steps when n allows so the BlockSpec pipeline
    # has work to overlap and both v7x TensorCores stay busy.
    tm = min(tm_max, max(128, _round_up(max(n // min_steps, 1), 8)))
    return min(tm, _round_up(n, 8))


def _supact(h, gamma, beta):
    # Supact: h * (gamma + sigmoid(beta*h) * (1 - gamma)), elementwise (f32).
    inv = jax.nn.sigmoid(beta * h)
    return (gamma + inv * (1.0 - gamma)) * h


def resblock_kernel(
    x_ref,      # (TM, IN_pad)        activation tile (f32 or bf16)
    wa_ref,     # (IN_pad, OUT_pad)   bf16 folded W1'   (identity skip)
                #   or (IN_pad, 2*OUT_pad) bf16 [Wskip | W1'] (real skip Linear)
    w2_ref,     # (OUT_pad, OUT_pad)  bf16 folded W2'
    vec_ref,    # (8, OUT_pad)        f32 packed [b1', g1, be1, b2', g2, be2, 0, 0]
    o_ref,      # (TM, OUT_pad)       output tile
):
    out_w = o_ref.shape[-1]

    x_raw = x_ref[...]
    x_f32 = x_raw.astype(jnp.float32)         # f32 kept for residual / math
    x_mm = x_raw.astype(wa_ref.dtype)         # bf16 for the MXU

    # One wide MXU matmul; f32 accumulation.
    ha = jnp.dot(x_mm, wa_ref[...], preferred_element_type=jnp.float32)

    if wa_ref.shape[-1] == 2 * out_w:
        # in_size != out_size: fused [Wskip | W1'] -> split (128-aligned lanes).
        xskip = ha[:, :out_w]
        h1 = ha[:, out_w:]
    else:
        # in_size == out_size: Identity skip -> direct f32 residual, no matmul.
        xskip = x_f32
        h1 = ha

    b1, g1, be1 = vec_ref[0:1, :], vec_ref[1:2, :], vec_ref[2:3, :]
    b2, g2, be2 = vec_ref[3:4, :], vec_ref[4:5, :], vec_ref[5:6, :]

    a1 = _supact(h1 + b1, g1, be1)

    h2 = jnp.dot(a1.astype(w2_ref.dtype), w2_ref[...],
                 preferred_element_type=jnp.float32) + b2
    a2 = _supact(h2, g2, be2)

    o_ref[...] = (a2 + xskip).astype(o_ref.dtype)


@functools.partial(jax.jit, static_argnames=("out_size", "tm", "out_dtype"))
def resblock_forward(x, wa, w2, vec, *, out_size, tm=None, out_dtype=None):
    """x: (N, in_size). wa/w2/vec: outputs of prepare_params()."""
    N, in_size = x.shape
    IN_pad, wa_cols = wa.shape
    OUT_pad = w2.shape[0]
    out_dtype = x.dtype if out_dtype is None else out_dtype

    if tm is None:
        tm = _pick_tm(N)
    tm = min(tm, _round_up(N, 8))
    N_pad = _round_up(N, tm)

    # Aligned fast path: no wrapper-side copy of x (padding would add a full
    # extra HBM read+write of the activation tensor at a mem-bound op).
    if N_pad != N or IN_pad != in_size:
        x_in = jnp.pad(x, ((0, N_pad - N), (0, IN_pad - in_size)))
    else:
        x_in = x

    # Resident (fetched-once, constant index_map) operands: single-buffer them
    # when large enough to matter for VMEM (v7x has only 64 MiB physical).
    w_bytes = (wa.size * wa.dtype.itemsize + w2.size * w2.dtype.itemsize
               + vec.size * vec.dtype.itemsize)
    single_buf = w_bytes > (4 << 20)
    n_buf_w = 1 if single_buf else 2

    def resident(shape):
        idx = lambda i: (0, 0)
        if single_buf:
            try:
                return pl.BlockSpec(shape, idx, pipeline_mode=pl.Buffered(1))
            except TypeError:  # pipeline_mode not available in this jax
                pass
        return pl.BlockSpec(shape, idx)

    # Explicit VMEM budget once tiles/weights outgrow the default scoped limit
    # (v5e default 16 MiB, v6e/v7x 32 MiB of the physical capacity).
    x_isz = jnp.dtype(x.dtype).itemsize
    o_isz = jnp.dtype(out_dtype).itemsize
    vmem_need = (2 * tm * IN_pad * x_isz + 2 * tm * OUT_pad * o_isz
                 + n_buf_w * w_bytes)
    vmem_limit = None
    if vmem_need * 1.3 > (14 << 20):
        try:
            cap = int(0.9 * pltpu.get_tpu_info().vmem_capacity_bytes)
        except Exception:
            cap = 64 << 20
        vmem_limit = int(min(vmem_need * 1.3 + (2 << 20), cap))

    out = pl.pallas_call(
        resblock_kernel,
        out_shape=jax.ShapeDtypeStruct((N_pad, OUT_pad), out_dtype),
        grid=(N_pad // tm,),
        in_specs=[
            pl.BlockSpec((tm, IN_pad), lambda i: (i, 0)),       # x tile (pipelined)
            resident((IN_pad, wa_cols)),                         # weights, fetched once
            resident((OUT_pad, OUT_pad)),
            resident((8, OUT_pad)),                              # packed vectors
        ],
        out_specs=pl.BlockSpec((tm, OUT_pad), lambda i: (i, 0)),
        compiler_params=pltpu.CompilerParams(
            dimension_semantics=("parallel",),
            vmem_limit_bytes=vmem_limit,
        ),
    )(x_in, wa, w2, vec)

    return out[:N, :out_size]


def prepare_params(p, in_size, out_size, *, weight_dtype=jnp.bfloat16):
    """Fold Affine layers into the Linear weights, pad to lane/MXU-friendly
    shapes, pack small vectors, and cast weights for the MXU. Done once,
    outside the kernel. On v7x, weight_dtype may be an fp8 dtype for very
    large layers (validate precision)."""
    IN_pad = _feature_pad(in_size)
    OUT_pad = _feature_pad(out_size)

    # layer(norm(z)) with norm(z)=gain*z+bias and layer(z)=z@W.T+b is exactly
    #   z @ (gain*W.T) + (b + bias * W.T.sum(axis=0)).
    w1_t = p["w1"].T                                    # (in, out)
    g1s, b1s = p["n1_gain"][0], p["n1_bias"][0]
    w1_f = g1s * w1_t
    b1_f = p["b1"] + b1s * jnp.sum(w1_t, axis=0)

    w2_t = p["w2"].T                                    # (out, out)
    g2s, b2s = p["n2_gain"][0], p["n2_bias"][0]
    w2_f = g2s * w2_t
    b2_f = p["b2"] + b2s * jnp.sum(w2_t, axis=0)

    def pad2(a, r, c):
        return jnp.pad(a, ((0, r - a.shape[0]), (0, c - a.shape[1])))

    def pad1(a, c, val=0.0):
        return jnp.pad(a, (0, c - a.shape[0]), constant_values=val)

    if in_size != out_size:
        # Real skip Linear: fuse [Wskip | W1'] into one wide matmul operand.
        wskip_t = p["wskip"].T                          # (in, out)
        wa = jnp.concatenate(
            [pad2(wskip_t, in_size, OUT_pad), pad2(w1_f, in_size, OUT_pad)], axis=1)
        wa = jnp.pad(wa, ((0, IN_pad - in_size), (0, 0)))
    else:
        wa = pad2(w1_f, IN_pad, OUT_pad)

    # Supact params are defined with size in_size but applied to Linear outputs
    # of width out_size; broadcast exactly as PyTorch would (errors otherwise).
    g1 = jnp.broadcast_to(p["g1"], (out_size,))
    be1 = jnp.broadcast_to(p["be1"], (out_size,))
    g2 = jnp.broadcast_to(p["g2"], (out_size,))
    be2 = jnp.broadcast_to(p["be2"], (out_size,))

    vec = jnp.zeros((8, OUT_pad), jnp.float32)
    vec = vec.at[0, :out_size].set(b1_f)
    vec = vec.at[1, :].set(pad1(g1, OUT_pad, 1.0))
    vec = vec.at[2, :out_size].set(be1)
    vec = vec.at[3, :out_size].set(b2_f)
    vec = vec.at[4, :].set(pad1(g2, OUT_pad, 1.0))
    vec = vec.at[5, :out_size].set(be2)

    return {
        "wa": wa.astype(weight_dtype),
        "w2": pad2(w2_f, OUT_pad, OUT_pad).astype(weight_dtype),
        "vec": vec,
    }


def make_params(key, in_size, out_size):
    """Deterministic synthetic parameters in native PyTorch layout."""
    ks = jax.random.split(key, 9)
    p = {}
    if in_size != out_size:
        p["wskip"] = jax.random.normal(ks[0], (out_size, in_size), jnp.float32) * 0.1
    p["w1"] = jax.random.normal(ks[1], (out_size, in_size), jnp.float32) * 0.1
    p["b1"] = jax.random.normal(ks[2], (out_size,), jnp.float32) * 0.1
    p["w2"] = jax.random.normal(ks[3], (out_size, out_size), jnp.float32) * 0.1
    p["b2"] = jax.random.normal(ks[4], (out_size,), jnp.float32) * 0.1
    p["n1_gain"] = jnp.array([1.1], jnp.float32)
    p["n1_bias"] = jnp.array([0.05], jnp.float32)
    p["n2_gain"] = jnp.array([0.9], jnp.float32)
    p["n2_bias"] = jnp.array([-0.02], jnp.float32)
    p["g1"] = jax.random.normal(ks[5], (in_size,), jnp.float32) * 0.2 + 1.0
    p["be1"] = jax.random.normal(ks[6], (in_size,), jnp.float32) * 0.2
    p["g2"] = jax.random.normal(ks[7], (in_size,), jnp.float32) * 0.2 + 1.0
    p["be2"] = jax.random.normal(ks[8], (in_size,), jnp.float32) * 0.2
    return p


def resblock_reference(x, p):
    """Exact f32 pure-JAX reference matching the PyTorch forward."""
    def supact(h, gamma, beta):
        inv = jax.nn.sigmoid(beta * h)
        return (gamma + inv * (1.0 - gamma)) * h

    xskip = x @ p["wskip"].T if "wskip" in p else x
    n1 = x * p["n1_gain"] + p["n1_bias"]
    o1 = supact(n1 @ p["w1"].T + p["b1"], p["g1"], p["be1"])
    n2 = o1 * p["n2_gain"] + p["n2_bias"]
    o2 = supact(n2 @ p["w2"].T + p["b2"], p["g2"], p["be2"]) + xskip
    return o2


def resblock_reference_matched(x, prep, out_size):
    """Pure-JAX reference replicating the kernel's exact numerics
    (folded affines, bf16 weights, f32 accumulation)."""
    wa, w2, vec = prep["wa"], prep["w2"], prep["vec"]
    IN_pad, OUT_pad = wa.shape[0], w2.shape[0]
    xp = jnp.pad(x, ((0, 0), (0, IN_pad - x.shape[1])))

    b1, g1, be1 = vec[0:1], vec[1:2], vec[2:3]
    b2, g2, be2 = vec[3:4], vec[4:5], vec[5:6]

    ha = jnp.dot(xp.astype(wa.dtype), wa, preferred_element_type=jnp.float32)
    if wa.shape[1] == 2 * OUT_pad:
        xskip, h1 = ha[:, :OUT_pad], ha[:, OUT_pad:]
    else:
        xskip, h1 = xp.astype(jnp.float32), ha
    a1 = _supact(h1 + b1, g1, be1)
    h2 = jnp.dot(a1.astype(w2.dtype), w2, preferred_element_type=jnp.float32) + b2
    a2 = _supact(h2, g2, be2)
    return (a2 + xskip)[:, :out_size]


def _run_case(key, N, in_size, out_size):
    kx, kp = jax.random.split(key)
    x = jax.random.normal(kx, (N, in_size), jnp.float32)
    params = make_params(kp, in_size, out_size)
    prep = prepare_params(params, in_size, out_size)

    out = resblock_forward(x, prep["wa"], prep["w2"], prep["vec"],
                           out_size=out_size)
    out = jax.block_until_ready(out)
    assert out.shape == (N, out_size)

    # Tight check against a numerically-matched reference (same bf16 weights).
    ref_matched = resblock_reference_matched(x, prep, out_size)
    assert jnp.allclose(out, ref_matched, atol=1e-4, rtol=1e-4), \
        "Pallas output mismatch vs matched (bf16-weight) reference"

    # Looser check against the exact f32 PyTorch-semantics reference
    # (difference is only bf16 weight rounding in the two matmuls).
    ref_f32 = resblock_reference(x, params)
    assert jnp.allclose(out, ref_f32, atol=5e-2, rtol=5e-2), \
        "Pallas output mismatch vs exact f32 reference"


if __name__ == "__main__":
    # NOTE: Supact(in_size) is applied to out_size-wide Linear outputs, so the
    # module (and this kernel) only broadcasts cleanly when in_size == out_size.
    key = jax.random.PRNGKey(0)
    k1, k2 = jax.random.split(key)

    # Aligned fast path: no wrapper-side pad, 2 grid steps (both v7x cores busy).
    _run_case(k1, N=256, in_size=128, out_size=128)
    # Ragged/padded path: batch and feature dims not tile-aligned.
    _run_case(k2, N=100, in_size=96, out_size=96)

    print("KERNEL_OK")
</pallas_src>

<mosaic_0001>
module attributes {stable_mosaic.version = 11 : i64} {
  func.func @resblock_kernel(%arg0: i32, %arg1: memref<128x128xf32, #tpu.memory_space<vmem>>, %arg2: memref<128x128xbf16, #tpu.memory_space<vmem>>, %arg3: memref<128x128xbf16, #tpu.memory_space<vmem>>, %arg4: memref<8x128xf32, #tpu.memory_space<vmem>>, %arg5: memref<128x128xf32, #tpu.memory_space<vmem>>) attributes {dimension_semantics = [#tpu.dimension_semantics<parallel>], iteration_bounds = array<i64: 2>, scalar_prefetch = 0 : i64, scratch_operands = 0 : i64, tpu.core_type = #tpu.core_type<tc>, window_params = [{transform_indices = @transform_0, window_bounds = array<i64: 128, 128>}, {pipeline_mode = #tpu.pipeline_mode<synchronous>, transform_indices = @transform_1, window_bounds = array<i64: 128, 128>}, {pipeline_mode = #tpu.pipeline_mode<synchronous>, transform_indices = @transform_2, window_bounds = array<i64: 128, 128>}, {pipeline_mode = #tpu.pipeline_mode<synchronous>, transform_indices = @transform_3, window_bounds = array<i64: 8, 128>}, {transform_indices = @transform_4, window_bounds = array<i64: 128, 128>}]} {
    %c0 = arith.constant 0 : index
    %c0_0 = arith.constant 0 : index
    %0 = vector.load %arg1[%c0, %c0_0] : memref<128x128xf32, #tpu.memory_space<vmem>>, vector<128x128xf32>
    %1 = arith.truncf %0 : vector<128x128xf32> to vector<128x128xbf16>
    %c0_1 = arith.constant 0 : index
    %c0_2 = arith.constant 0 : index
    %2 = vector.load %arg2[%c0_1, %c0_2] : memref<128x128xbf16, #tpu.memory_space<vmem>>, vector<128x128xbf16>
    %cst = arith.constant dense<0.000000e+00> : vector<128x128xf32>
    %3 = tpu.matmul %1, %2, %cst {dimension_numbers = #tpu.dot_dimension_numbers<[1], [0], [0], [1], [0, 0, 1, 1], [], []>} : vector<128x128xbf16>, vector<128x128xbf16>, vector<128x128xf32> -> vector<128x128xf32>
    %c0_3 = arith.constant 0 : index
    %c0_4 = arith.constant 0 : index
    %4 = vector.load %arg4[%c0_3, %c0_4] : memref<8x128xf32, #tpu.memory_space<vmem>>, vector<1x128xf32>
    %c1 = arith.constant 1 : index
    %c0_5 = arith.constant 0 : index
    %5 = vector.load %arg4[%c1, %c0_5] : memref<8x128xf32, #tpu.memory_space<vmem>>, vector<1x128xf32>
    %c2 = arith.constant 2 : index
    %c0_6 = arith.constant 0 : index
    %6 = vector.load %arg4[%c2, %c0_6] : memref<8x128xf32, #tpu.memory_space<vmem>>, vector<1x128xf32>
    %c3 = arith.constant 3 : index
    %c0_7 = arith.constant 0 : index
    %7 = vector.load %arg4[%c3, %c0_7] : memref<8x128xf32, #tpu.memory_space<vmem>>, vector<1x128xf32>
    %c4 = arith.constant 4 : index
    %c0_8 = arith.constant 0 : index
    %8 = vector.load %arg4[%c4, %c0_8] : memref<8x128xf32, #tpu.memory_space<vmem>>, vector<1x128xf32>
    %c5 = arith.constant 5 : index
    %c0_9 = arith.constant 0 : index
    %9 = vector.load %arg4[%c5, %c0_9] : memref<8x128xf32, #tpu.memory_space<vmem>>, vector<1x128xf32>
    %10 = vector.broadcast %4 : vector<1x128xf32> to vector<128x128xf32>
    %11 = arith.addf %3, %10 : vector<128x128xf32>
    %12 = vector.broadcast %6 : vector<1x128xf32> to vector<128x128xf32>
    %13 = arith.mulf %12, %11 : vector<128x128xf32>
    %14 = arith.negf %13 : vector<128x128xf32>
    %15 = math.exp %14 : vector<128x128xf32>
    %cst_10 = arith.constant 1.000000e+00 : f32
    %16 = vector.broadcast %cst_10 : f32 to vector<128x128xf32>
    %17 = arith.addf %16, %15 : vector<128x128xf32>
    %18 = arith.divf %16, %17 : vector<128x128xf32>
    %cst_11 = arith.constant 1.000000e+00 : f32
    %19 = vector.broadcast %cst_11 : f32 to vector<1x128xf32>
    %20 = arith.subf %19, %5 : vector<1x128xf32>
    %21 = vector.broadcast %20 : vector<1x128xf32> to vector<128x128xf32>
    %22 = arith.mulf %18, %21 : vector<128x128xf32>
    %23 = vector.broadcast %5 : vector<1x128xf32> to vector<128x128xf32>
    %24 = arith.addf %23, %22 : vector<128x128xf32>
    %25 = arith.mulf %24, %11 : vector<128x128xf32>
    %26 = arith.truncf %25 : vector<128x128xf32> to vector<128x128xbf16>
    %c0_12 = arith.constant 0 : index
    %c0_13 = arith.constant 0 : index
    %27 = vector.load %arg3[%c0_12, %c0_13] : memref<128x128xbf16, #tpu.memory_space<vmem>>, vector<128x128xbf16>
    %cst_14 = arith.constant dense<0.000000e+00> : vector<128x128xf32>
    %28 = tpu.matmul %26, %27, %cst_14 {dimension_numbers = #tpu.dot_dimension_numbers<[1], [0], [0], [1], [0, 0, 1, 1], [], []>} : vector<128x128xbf16>, vector<128x128xbf16>, vector<128x128xf32> -> vector<128x128xf32>
    %29 = vector.broadcast %7 : vector<1x128xf32> to vector<128x128xf32>
    %30 = arith.addf %28, %29 : vector<128x128xf32>
    %31 = vector.broadcast %9 : vector<1x128xf32> to vector<128x128xf32>
    %32 = arith.mulf %31, %30 : vector<128x128xf32>
    %33 = arith.negf %32 : vector<128x128xf32>
    %34 = math.exp %33 : vector<128x128xf32>
    %cst_15 = arith.constant 1.000000e+00 : f32
    %35 = vector.broadcast %cst_15 : f32 to vector<128x128xf32>
    %36 = arith.addf %35, %34 : vector<128x128xf32>
    %37 = arith.divf %35, %36 : vector<128x128xf32>
    %cst_16 = arith.constant 1.000000e+00 : f32
    %38 = vector.broadcast %cst_16 : f32 to vector<1x128xf32>
    %39 = arith.subf %38, %8 : vector<1x128xf32>
    %40 = vector.broadcast %39 : vector<1x128xf32> to vector<128x128xf32>
    %41 = arith.mulf %37, %40 : vector<128x128xf32>
    %42 = vector.broadcast %8 : vector<1x128xf32> to vector<128x128xf32>
    %43 = arith.addf %42, %41 : vector<128x128xf32>
    %44 = arith.mulf %43, %30 : vector<128x128xf32>
    %45 = arith.addf %44, %0 : vector<128x128xf32>
    %c0_17 = arith.constant 0 : index
    %c0_18 = arith.constant 0 : index
    %46 = vector.load %arg5[%c0_17, %c0_18] : memref<128x128xf32, #tpu.memory_space<vmem>>, vector<128x128xf32>
    tpu.vector_store %arg5[%c0_17, %c0_18], %45 {strides = array<i32>} : memref<128x128xf32, #tpu.memory_space<vmem>>, vector<128x128xf32>,
    return
  }
  func.func @transform_0(%arg0: i32) -> (i32, i32) {
    %c0_i32 = arith.constant 0 : i32
    %c0_i32_0 = arith.constant 0 : i32
    return %arg0, %c0_i32 : i32, i32
  }
  func.func @transform_1(%arg0: i32) -> (i32, i32) {
    %c0_i32 = arith.constant 0 : i32
    %c0_i32_0 = arith.constant 0 : i32
    %c0_i32_1 = arith.constant 0 : i32
    return %c0_i32, %c0_i32_0 : i32, i32
  }
  func.func @transform_2(%arg0: i32) -> (i32, i32) {
    %c0_i32 = arith.constant 0 : i32
    %c0_i32_0 = arith.constant 0 : i32
    %c0_i32_1 = arith.constant 0 : i32
    return %c0_i32, %c0_i32_0 : i32, i32
  }
  func.func @transform_3(%arg0: i32) -> (i32, i32) {
    %c0_i32 = arith.constant 0 : i32
    %c0_i32_0 = arith.constant 0 : i32
    %c0_i32_1 = arith.constant 0 : i32
    return %c0_i32, %c0_i32_0 : i32, i32
  }
  func.func @transform_4(%arg0: i32) -> (i32, i32) {
    %c0_i32 = arith.constant 0 : i32
    %c0_i32_0 = arith.constant 0 : i32
    return %arg0, %c0_i32 : i32, i32
  }
}

</mosaic_0001>

<llo_original>
// kernel: resblock_forward.1
$region0: #{resblock_forward.1}
  #allocation0 [shape = 'u32[]', space=smem, size = 0x4, offset = 0x4, fixed_abs, tag = 'smem constant byte address 0x4 - core index']
  #allocation1 [shape = 'u32[144,128]{1,0:T(1,128)}', space=vmem, size = 0x12000, scoped, tag = 'internal scratch']
  %s0 = inlined_call_operand.hbm [shape: f32[256,128], index: 0, kind: input, shape index: {}]
  %s1 = inlined_call_operand.hbm [shape: bf16[128,128], index: 1, kind: input, shape index: {}]
  %s2 = inlined_call_operand.hbm [shape: bf16[128,128], index: 2, kind: input, shape index: {}]
  %s3 = inlined_call_operand.vmem [shape: f32[8,128], index: 3, kind: input, shape index: {}]
  %s4 = inlined_call_operand.hbm [shape: f32[256,128], index: 4, kind: output, shape index: {}]
  %s5 = sld [smem:[#allocation0]]
  $region61: #{resblock_forward.1} parent=0
    _
  %s7 = ssub.s32 1, %s5
  %s8 = scalar_select 0, %s7, %s5
  $region1: #{resblock_forward.1} parent=0
    #allocation2 [shape = 'u8[131072]{0}', space=vmem, size = 0x20000, scoped, tag = 'input window, operand 0']
    #allocation3 [shape = 's32[2]{0}', space=sflag, size = 0x8, scoped, tag = 'scoped memory for resblock_forward.1']
    #allocation4 [shape = 's32[2]{0}', space=sflag, size = 0x8, scoped, tag = 'scoped memory for resblock_forward.1']
    #allocation5 [shape = 'u8[32768]{0}', space=vmem, size = 0x8000, scoped, tag = 'input window, operand 1, single buffered']
    #allocation6 [shape = 's32[1]{0}', space=sflag, size = 0x4, scoped, tag = 'scoped memory for resblock_forward.1']
    #allocation7 [shape = 'u8[32768]{0}', space=vmem, size = 0x8000, scoped, tag = 'input window, operand 2, single buffered']
    #allocation8 [shape = 'u8[131072]{0}', space=vmem, size = 0x20000, scoped, tag = 'output window, operand 0']
    %9 = vsyncpa [#allocation3], 0
    %s10 = scalar_lea.sflag [#allocation3], 1
    %11 = vsyncpa %s10, 0
    %12 = vsyncpa [#allocation6], 0
    %13 = vsyncpa [#allocation4], 0
    %s14 = scalar_lea.sflag [#allocation4], 1
    %15 = vsyncpa %s14, 0
    loop: start=0, step=1, limit=4
    $region2: #{resblock_forward.1} parent=1 // loop_pre_header
      _
    $region3: #{resblock_forward.1} parent=1 // loop_header
      %s17 = sphi 0, %s21
      %p18 = scmp.ge.s32.totalorder %s17, 4
      %s27 = sphi 0, %s29
      %s30 = sphi 0, %s27
      %s31 = sphi 0, %s30
      %s47 = sphi 0, %s31
      %s51 = sphi 0, %s51
      %s53 = sphi 0, %s51
      %s54 = sphi 0, %s53
      %s68 = sphi 0, %s54
      %s72 = sphi 0, %s72
      %s74 = sphi 0, %s72
      %s75 = sphi 0, %s74
      %s89 = sphi 0, %s75
      %s93 = sphi 0, %s93
      %s95 = sphi 0, %s93
      %s96 = sphi 0, %s95
      %s110 = sphi 0, %s96
      %s116 = sphi 0, %s118
      %s119 = sphi 0, %s116
      %s120 = sphi 0, %s119
      %s136 = sphi 0, %s120
    $region4: #{resblock_forward.1} parent=1 // loop_header_branch
      %20 = sbr.rel (%p18) target = $region8
    $region5: #{resblock_forward.1} parent=1 // loop_body
      %s22 = ssub.s32 %s17, 1
      %s23 = ssub.s32 %s17, 2
      %s24 = sadd.s32 %s17, 1
      %s25 = ssub.s32 %s17, %s24
      %p26 = scmp.eq.s32.totalorder %s25, 0
      %s28 = sadd.s32 %s27, 1
      %s29 = scalar_select %p26, %s27, %s28
      %p32 = pneg %p26
      %p33 = scmp.eq.s32.totalorder %s17, 1
      %p34 = por %p32, %p33
      %p35 = scmp.ne.s32.totalorder %s27, %s30
      %p36 = scmp.eq.s32.totalorder %s17, 0
      %p37 = por %p35, %p36
      %p38 = scmp.ne.s32.totalorder %s27, %s30
      %p39 = scmp.eq.s32.totalorder %s22, 1
      %p40 = por %p38, %p39
      %p41 = scmp.ne.s32.totalorder %s30, %s31
      %p42 = scmp.eq.s32.totalorder %s22, 0
      %p43 = por %p41, %p42
      %p44 = scmp.ne.s32.totalorder %s30, %s31
      %p45 = scmp.eq.s32.totalorder %s23, 1
      %p46 = por %p44, %p45
      %p48 = scmp.ne.s32.totalorder %s31, %s47
      %p49 = scmp.eq.s32.totalorder %s23, 0
      %p50 = por %p48, %p49
      %s52 = sadd.s32 %s51, 1
      %p55 = scmp.eq.s32.totalorder %s17, 1
      %p56 = scmp.ne.s32.totalorder %s51, %s53
      %p57 = scmp.eq.s32.totalorder %s17, 0
      %p58 = por %p56, %p57
      %p59 = scmp.ne.s32.totalorder %s51, %s53
      %p60 = scmp.eq.s32.totalorder %s22, 1
      %p61 = por %p59, %p60
      %p62 = scmp.ne.s32.totalorder %s53, %s54
      %p63 = scmp.eq.s32.totalorder %s22, 0
      %p64 = por %p62, %p63
      %p65 = scmp.ne.s32.totalorder %s53, %s54
      %p66 = scmp.eq.s32.totalorder %s23, 1
      %p67 = por %p65, %p66
      %p69 = scmp.ne.s32.totalorder %s54, %s68
      %p70 = scmp.eq.s32.totalorder %s23, 0
      %p71 = por %p69, %p70
      %s73 = sadd.s32 %s72, 1
      %p76 = scmp.eq.s32.totalorder %s17, 1
      %p77 = scmp.ne.s32.totalorder %s72, %s74
      %p78 = scmp.eq.s32.totalorder %s17, 0
      %p79 = por %p77, %p78
      %p80 = scmp.ne.s32.totalorder %s72, %s74
      %p81 = scmp.eq.s32.totalorder %s22, 1
      %p82 = por %p80, %p81
      %p83 = scmp.ne.s32.totalorder %s74, %s75
      %p84 = scmp.eq.s32.totalorder %s22, 0
      %p85 = por %p83, %p84
      %p86 = scmp.ne.s32.totalorder %s74, %s75
      %p87 = scmp.eq.s32.totalorder %s23, 1
      %p88 = por %p86, %p87
      %p90 = scmp.ne.s32.totalorder %s75, %s89
      %p91 = scmp.eq.s32.totalorder %s23, 0
      %p92 = por %p90, %p91
      %s94 = sadd.s32 %s93, 1
      %p97 = scmp.eq.s32.totalorder %s17, 1
      %p98 = scmp.ne.s32.totalorder %s93, %s95
      %p99 = scmp.eq.s32.totalorder %s17, 0
      %p100 = por %p98, %p99
      %p101 = scmp.ne.s32.totalorder %s93, %s95
      %p102 = scmp.eq.s32.totalorder %s22, 1
      %p103 = por %p101, %p102
      %p104 = scmp.ne.s32.totalorder %s95, %s96
      %p105 = scmp.eq.s32.totalorder %s22, 0
      %p106 = por %p104, %p105
      %p107 = scmp.ne.s32.totalorder %s95, %s96
      %p108 = scmp.eq.s32.totalorder %s23, 1
      %p109 = por %p107, %p108
      %p111 = scmp.ne.s32.totalorder %s96, %s110
      %p112 = scmp.eq.s32.totalorder %s23, 0
      %p113 = por %p111, %p112
      %s114 = ssub.s32 %s17, %s24
      %p115 = scmp.eq.s32.totalorder %s114, 0
      %s117 = sadd.s32 %s116, 1
      %s118 = scalar_select %p115, %s116, %s117
      %p121 = pneg %p115
      %p122 = scmp.eq.s32.totalorder %s17, 1
      %p123 = por %p121, %p122
      %p124 = scmp.ne.s32.totalorder %s116, %s119
      %p125 = scmp.eq.s32.totalorder %s17, 0
      %p126 = por %p124, %p125
      %p127 = scmp.ne.s32.totalorder %s116, %s119
      %p128 = scmp.eq.s32.totalorder %s22, 1
      %p129 = por %p127, %p128
      %p130 = scmp.ne.s32.totalorder %s119, %s120
      %p131 = scmp.eq.s32.totalorder %s22, 0
      %p132 = por %p130, %p131
      %p133 = scmp.ne.s32.totalorder %s119, %s120
      %p134 = scmp.eq.s32.totalorder %s23, 1
      %p135 = por %p133, %p134
      %p137 = scmp.ne.s32.totalorder %s120, %s136
      %p138 = scmp.eq.s32.totalorder %s23, 0
      %p139 = por %p137, %p138
      %p140 = scmp.le.s32.totalorder 1, %s17
      %p141 = scmp.lt.s32.totalorder %s17, 3
      %p142 = pnand %p140, %p141
      %p143 = pneg %p142
      // Predicated region
      $region9: #{resblock_forward.1} parent=5 // pred_check
        _
      $region10: #{resblock_forward.1} parent=5 // pred_check_branch
        %145 = sbr.rel (%p142) target = $region12
      $region11: #{resblock_forward.1} parent=5 // pred_region
        %s146 = ssub.s32 %s17, 1
        // Predicated region
        $region13: #{resblock_forward.1} parent=11 // pred_check
          %p147 = pneg %p64
        $region14: #{resblock_forward.1} parent=11 // pred_check_branch
          %149 = sbr.rel (%p147) target = $region16
        $region15: #{resblock_forward.1} parent=11 // pred_region
          %s151 = ssub.s32 1024, 1024
          %152 = vsyncadd [#allocation6], %s151
          %s153 = sshll.u32 [#allocation5], 4
          %s154 = int_to_ptr.vmem [resolvable:$true] %s153
          %159 = dma.hbm_to_vmem [thread:$0]  %s1, 1024, %s154, [#allocation6], 64, 64, 4
        $region16: #{resblock_forward.1} parent=11 // pred_fallthru
          _
        // Predicated region
        $region17: #{resblock_forward.1} parent=11 // pred_check
          %p160 = pneg %p85
        $region18: #{resblock_forward.1} parent=11 // pred_check_branch
          %162 = sbr.rel (%p160) target = $region20
        $region19: #{resblock_forward.1} parent=11 // pred_region
          %s164 = ssub.s32 1024, 1024
          %165 = vsyncadd [#allocation6], %s164
          %s166 = sshll.u32 [#allocation7], 4
          %s167 = int_to_ptr.vmem [resolvable:$true] %s166
          %172 = dma.hbm_to_vmem [thread:$0]  %s2, 1024, %s167, [#allocation6], 64, 64, 4
        $region20: #{resblock_forward.1} parent=11 // pred_fallthru
          _
        // Predicated region
        $region21: #{resblock_forward.1} parent=11 // pred_check
          %p173 = pneg %p106
        $region22: #{resblock_forward.1} parent=11 // pred_check_branch
          %175 = sbr.rel (%p173) target = $region24
        $region23: #{resblock_forward.1} parent=11 // pred_region
          _
        $region24: #{resblock_forward.1} parent=11 // pred_fallthru
          _
      $region12: #{resblock_forward.1} parent=5 // pred_fallthru
        _
      %p176 = scmp.lt.s32.totalorder %s17, 2
      // Predicated region
      $region25: #{resblock_forward.1} parent=5 // pred_check
        %p177 = pneg %p176
      $region26: #{resblock_forward.1} parent=5 // pred_check_branch
        %179 = sbr.rel (%p177) target = $region28
      $region27: #{resblock_forward.1} parent=5 // pred_region
        // Predicated region
        $region29: #{resblock_forward.1} parent=27 // pred_check
          %p180 = pneg %p37
        $region30: #{resblock_forward.1} parent=27 // pred_check_branch
          %182 = sbr.rel (%p180) target = $region32
        $region31: #{resblock_forward.1} parent=27 // pred_region
          %s183 = sand.u32 %s27, 1
          %s184 = scalar_lea.sflag [#allocation3], %s183
          %s185 = sand.u32 %s27, 1
          %s186 = smul.addr %s185, 128
          %s187 = scalar_lea.vmem [#allocation2], %s186
          %s188 = smul.u32 16, %s17
          %s190 = ssub.s32 2048, 2048
          %191 = vsyncadd %s184, %s190
          %s192 = smul.addr %s188, 128
          %s193 = scalar_lea.hbm %s0, %s192
          %s194 = sshll.u32 %s187, 4
          %s195 = int_to_ptr.vmem [resolvable:$true] %s194
          %200 = dma.hbm_to_vmem [thread:$0]  %s193, 2048, %s195, %s184, 128, 128, 8
        $region32: #{resblock_forward.1} parent=27 // pred_fallthru
          _
      $region28: #{resblock_forward.1} parent=5 // pred_fallthru
        _
      %p201 = scmp.le.s32.totalorder 1, %s17
      %p202 = scmp.lt.s32.totalorder %s17, 3
      %p203 = pnand %p201, %p202
      %p204 = pneg %p203
      // Predicated region
      $region33: #{resblock_forward.1} parent=5 // pred_check
        _
      $region34: #{resblock_forward.1} parent=5 // pred_check_branch
        %206 = sbr.rel (%p203) target = $region36
      $region35: #{resblock_forward.1} parent=5 // pred_region
        %s207 = ssub.s32 %s17, 1
        %s208 = sand.u32 %s30, 1
        %s209 = scalar_lea.sflag [#allocation3], %s208
        %s210 = sand.u32 %s30, 1
        %s211 = smul.addr %s210, 128
        %s212 = scalar_lea.vmem [#allocation2], %s211
        // Predicated region
        $region37: #{resblock_forward.1} parent=35 // pred_check
          %p213 = pneg %p43
        $region38: #{resblock_forward.1} parent=35 // pred_check_branch
          %215 = sbr.rel (%p213) target = $region40
        $region39: #{resblock_forward.1} parent=35 // pred_region
          %216 = dma.done %s209, 2048
        $region40: #{resblock_forward.1} parent=35 // pred_fallthru
          _
        // Predicated region
        $region41: #{resblock_forward.1} parent=35 // pred_check
          %p217 = pneg %p64
        $region42: #{resblock_forward.1} parent=35 // pred_check_branch
          %219 = sbr.rel (%p217) target = $region44
        $region43: #{resblock_forward.1} parent=35 // pred_region
          %220 = dma.done [#allocation6], 1024
        $region44: #{resblock_forward.1} parent=35 // pred_fallthru
          _
        // Predicated region
        $region45: #{resblock_forward.1} parent=35 // pred_check
          %p221 = pneg %p85
        $region46: #{resblock_forward.1} parent=35 // pred_check_branch
          %223 = sbr.rel (%p221) target = $region48
        $region47: #{resblock_forward.1} parent=35 // pred_region
          %224 = dma.done [#allocation6], 1024
        $region48: #{resblock_forward.1} parent=35 // pred_fallthru
          _
        %s225 = sand.u32 %s30, 1
        %s226 = scalar_lea.sflag [#allocation3], %s225
        %s227 = sand.u32 %s30, 1
        %s228 = smul.addr %s227, 128
        %s229 = scalar_lea.vmem [#allocation2], %s228
        %p230 = pneg %p43
        %p231 = pneg %p40
        %p232 = pneg %p64
        %p233 = pneg %p61
        %p234 = pneg %p85
        %p235 = pneg %p82
        %p236 = pneg %p106
        %p237 = pneg %p103
        %p238 = pneg %p132
        %p239 = pneg %p129
        %s240 = sand.u32 %s119, 1
        %s241 = scalar_lea.sflag [#allocation4], %s240
        %s242 = sand.u32 %s119, 1
        %s243 = smul.addr %s242, 128
        %s244 = scalar_lea.vmem [#allocation8], %s243
        %s245 = smul.u32 16, %s22
        %s246 = smul.u32 16, %s22
        %v248 = vld [vmem:[%s212] sm:$0xff]
        %v249 = vld [vmem:[%s212 + $0x8] sm:$0xff]
        %v250 = vld [vmem:[%s212 + $0x10] sm:$0xff]
        %v251 = vld [vmem:[%s212 + $0x18] sm:$0xff]
        %v252 = vld [vmem:[%s212 + $0x20] sm:$0xff]
        %v253 = vld [vmem:[%s212 + $0x28] sm:$0xff]
        %v254 = vld [vmem:[%s212 + $0x30] sm:$0xff]
        %v255 = vld [vmem:[%s212 + $0x38] sm:$0xff]
        %v256 = vld [vmem:[%s212 + $0x40] sm:$0xff]
        %v257 = vld [vmem:[%s212 + $0x48] sm:$0xff]
        %v258 = vld [vmem:[%s212 + $0x50] sm:$0xff]
        %v259 = vld [vmem:[%s212 + $0x58] sm:$0xff]
        %v260 = vld [vmem:[%s212 + $0x60] sm:$0xff]
        %v261 = vld [vmem:[%s212 + $0x68] sm:$0xff]
        %v262 = vld [vmem:[%s212 + $0x70] sm:$0xff]
        %v263 = vld [vmem:[%s212 + $0x78] sm:$0xff]
        %v264 = vpack.c.bf16 %v249, %v248
        %v265 = vpack.c.bf16 %v251, %v250
        %v266 = vpack.c.bf16 %v253, %v252
        %v267 = vpack.c.bf16 %v255, %v254
        %v268 = vpack.c.bf16 %v257, %v256
        %v269 = vpack.c.bf16 %v259, %v258
        %v270 = vpack.c.bf16 %v261, %v260
        %v271 = vpack.c.bf16 %v263, %v262
        %v272 = vld [vmem:[#allocation5] sm:$0xf]
        %v273 = vld [vmem:[#allocation5 + $0x4] sm:$0xf]
        %v274 = vld [vmem:[#allocation5 + $0x8] sm:$0xf]
        %v275 = vld [vmem:[#allocation5 + $0xc] sm:$0xf]
        %v276 = vld [vmem:[#allocation5 + $0x10] sm:$0xf]
        %v277 = vld [vmem:[#allocation5 + $0x14] sm:$0xf]
        %v278 = vld [vmem:[#allocation5 + $0x18] sm:$0xf]
        %v279 = vld [vmem:[#allocation5 + $0x1c] sm:$0xf]
        %v280 = vld [vmem:[#allocation5 + $0x20] sm:$0xf]
        %v281 = vld [vmem:[#allocation5 + $0x24] sm:$0xf]
        %v282 = vld [vmem:[#allocation5 + $0x28] sm:$0xf]
        %v283 = vld [vmem:[#allocation5 + $0x2c] sm:$0xf]
        %v284 = vld [vmem:[#allocation5 + $0x30] sm:$0xf]
        %v285 = vld [vmem:[#allocation5 + $0x34] sm:$0xf]
        %v286 = vld [vmem:[#allocation5 + $0x38] sm:$0xf]
        %v287 = vld [vmem:[#allocation5 + $0x3c] sm:$0xf]
        %v288 = vld [vmem:[%s3] sm:$0x1]
        %v289 = vld [vmem:[%s3 + $0x1] sm:$0x1]
        %v290 = vld [vmem:[%s3 + $0x2] sm:$0x1]
        %v291 = vld [vmem:[%s3 + $0x3] sm:$0x1]
        %v292 = vld [vmem:[%s3 + $0x4] sm:$0x1]
        %v293 = vld [vmem:[%s3 + $0x5] sm:$0x1]
        %v294 = vlaneseq
        %v295 = vshrl.u32 %v294, 7
        %v296 = vsub.s32 0, %v295
        %v297 = vrot.slane %v288, %v296
        %v314 = vunpack.c.l.b16 %v272
        %v315 = vunpack.c.l.b16 %v273
        %v316 = vunpack.c.l.b16 %v274
        %v317 = vunpack.c.l.b16 %v275
        %v318 = vunpack.c.l.b16 %v276
        %v319 = vunpack.c.l.b16 %v277
        %v320 = vunpack.c.l.b16 %v278
        %v321 = vunpack.c.l.b16 %v279
        %v322 = vunpack.c.l.b16 %v280
        %v323 = vunpack.c.l.b16 %v281
        %v324 = vunpack.c.l.b16 %v282
        %v325 = vunpack.c.l.b16 %v283
        %v326 = vunpack.c.l.b16 %v284
        %v327 = vunpack.c.l.b16 %v285
        %v328 = vunpack.c.l.b16 %v286
        %v329 = vunpack.c.l.b16 %v287
        %v330 = vpack.c.b16 %v315, %v314
        %v331 = vpack.c.b16 %v317, %v316
        %v332 = vpack.c.b16 %v319, %v318
        %v333 = vpack.c.b16 %v321, %v320
        %v334 = vpack.c.b16 %v323, %v322
        %v335 = vpack.c.b16 %v325, %v324
        %v336 = vpack.c.b16 %v327, %v326
        %v337 = vpack.c.b16 %v329, %v328
        %346 = vmatprep.subr.bf16.mxu0 0
        %347 = vmatpush1.bf16.msra.mxu0 %v330
        %348 = vmatprep.subr.bf16.mxu0 0
        %349 = vmatpush1.bf16.msra.mxu0 %v331
        %350 = vmatprep.subr.bf16.mxu0 0
        %351 = vmatpush1.bf16.msra.mxu0 %v332
        %352 = vmatprep.subr.bf16.mxu0 0
        %353 = vmatpush1.bf16.msra.mxu0 %v333
        %354 = vmatprep.subr.bf16.mxu0 0
        %355 = vmatpush1.bf16.msra.mxu0 %v334
        %356 = vmatprep.subr.bf16.mxu0 0
        %357 = vmatpush1.bf16.msra.mxu0 %v335
        %358 = vmatprep.subr.bf16.mxu0 0
        %359 = vmatpush1.bf16.msra.mxu0 %v336
        %360 = vmatprep.subr.bf16.mxu0 0
        %361 = vmatpush1.bf16.msra.mxu0 %v337
        %362 = vmatprep.subr.bf16.mxu0 0
        %363 = vmatpush1.bf16.msra.mxu0 0
        %364 = vmatprep.subr.bf16.mxu0 0
        %365 = vmatpush1.bf16.msra.mxu0 0
        %366 = vmatprep.subr.bf16.mxu0 0
        %367 = vmatpush1.bf16.msra.mxu0 0
        %368 = vmatprep.subr.bf16.mxu0 0
        %369 = vmatpush1.bf16.msra.mxu0 0
        %370 = vmatprep.subr.bf16.mxu0 0
        %371 = vmatpush1.bf16.msra.mxu0 0
        %372 = vmatprep.subr.bf16.mxu0 0
        %373 = vmatpush1.bf16.msra.mxu0 0
        %374 = vmatprep.subr.bf16.mxu0 0
        %375 = vmatpush1.bf16.msra.mxu0 0
        %376 = vmatprep.subr.bf16.mxu0 0
        %377 = vmatpush1.bf16.msra.mxu0 0
        %378 = vmatprep.mubr.bf16.mxu0 0
        %379 = vmatmul.mubr.bf16.gmra.mrb[0].mxu0 %v264
        %v380 = vpop.f32.mrb[0].mxu0
        %v381 = vadd.f32 %v297, %v380
        %v382 = vpop.f32.mrb[0].mxu0
        %v383 = vpop.f32.mrb[0].mxu0
        %v384 = vadd.f32 %v297, %v383
        %v385 = vpop.f32.mrb[0].mxu0
        %386 = vmatprep.mubr.bf16.mxu0 0
        %387 = vmatmul.mubr.bf16.gmra.mrb[0].mxu0 %v265
        %v388 = vpop.f32.mrb[0].mxu0
        %v389 = vadd.f32 %v297, %v388
        %v390 = vpop.f32.mrb[0].mxu0
        %v391 = vpop.f32.mrb[0].mxu0
        %v392 = vadd.f32 %v297, %v391
        %v393 = vpop.f32.mrb[0].mxu0
        %394 = vmatprep.mubr.bf16.mxu0 0
        %395 = vmatmul.mubr.bf16.gmra.mrb[0].mxu0 %v266
        %v396 = vpop.f32.mrb[0].mxu0
        %v397 = vadd.f32 %v297, %v396
        %v398 = vpop.f32.mrb[0].mxu0
        %v399 = vpop.f32.mrb[0].mxu0
        %v400 = vadd.f32 %v297, %v399
        %v401 = vpop.f32.mrb[0].mxu0
        %402 = vmatprep.mubr.bf16.mxu0 0
        %403 = vmatmul.mubr.bf16.gmra.mrb[0].mxu0 %v267
        %v404 = vpop.f32.mrb[0].mxu0
        %v405 = vadd.f32 %v297, %v404
        %v406 = vpop.f32.mrb[0].mxu0
        %v407 = vpop.f32.mrb[0].mxu0
        %v408 = vadd.f32 %v297, %v407
        %v409 = vpop.f32.mrb[0].mxu0
        %410 = vmatprep.mubr.bf16.mxu0 0
        %411 = vmatmul.mubr.bf16.gmra.mrb[0].mxu0 %v268
        %v412 = vpop.f32.mrb[0].mxu0
        %v413 = vadd.f32 %v297, %v412
        %v414 = vpop.f32.mrb[0].mxu0
        %v415 = vpop.f32.mrb[0].mxu0
        %v416 = vadd.f32 %v297, %v415
        %v417 = vpop.f32.mrb[0].mxu0
        %418 = vmatprep.mubr.bf16.mxu0 0
        %419 = vmatmul.mubr.bf16.gmra.mrb[0].mxu0 %v269
        %v420 = vpop.f32.mrb[0].mxu0
        %v421 = vadd.f32 %v297, %v420
        %v422 = vpop.f32.mrb[0].mxu0
        %v423 = vpop.f32.mrb[0].mxu0
        %v424 = vadd.f32 %v297, %v423
        %v425 = vpop.f32.mrb[0].mxu0
        %426 = vmatprep.mubr.bf16.mxu0 0
        %427 = vmatmul.mubr.bf16.gmra.mrb[0].mxu0 %v270
        %v428 = vpop.f32.mrb[0].mxu0
        %v429 = vadd.f32 %v297, %v428
        %v430 = vpop.f32.mrb[0].mxu0
        %v431 = vpop.f32.mrb[0].mxu0
        %v432 = vadd.f32 %v297, %v431
        %v433 = vpop.f32.mrb[0].mxu0
        %434 = vmatprep.mubr.bf16.mxu0 0
        %435 = vmatmul.mubr.bf16.gmra.mrb[0].mxu0 %v271
        %v436 = vpop.f32.mrb[0].mxu0
        %v437 = vadd.f32 %v297, %v436
        %v438 = vpop.f32.mrb[0].mxu0
        %v439 = vpop.f32.mrb[0].mxu0
        %v440 = vadd.f32 %v297, %v439
        %v441 = vpop.f32.mrb[0].mxu0
        %442 = vdwg.mxu0
        %v443 = vlaneseq
        %v444 = vshrl.u32 %v443, 7
        %v445 = vsub.s32 0, %v444
        %v446 = vrot.slane %v290, %v445
        %v447 = vmul.f32 %v446, %v381
        %v448 = vmul.f32 %v446, %v384
        %v449 = vmul.f32 %v446, %v389
        %v450 = vmul.f32 %v446, %v392
        %v451 = vmul.f32 %v446, %v397
        %v452 = vmul.f32 %v446, %v400
        %v453 = vmul.f32 %v446, %v405
        %v454 = vmul.f32 %v446, %v408
        %v455 = vmul.f32 %v446, %v413
        %v456 = vmul.f32 %v446, %v416
        %v457 = vmul.f32 %v446, %v421
        %v458 = vmul.f32 %v446, %v424
        %v459 = vmul.f32 %v446, %v429
        %v460 = vmul.f32 %v446, %v432
        %v461 = vmul.f32 %v446, %v437
        %v462 = vmul.f32 %v446, %v440
        %v463 = vxor.u32 %v447, 2147483648
        %v464 = vxor.u32 %v448, 2147483648
        %v465 = vxor.u32 %v449, 2147483648
        %v466 = vxor.u32 %v450, 2147483648
        %v467 = vxor.u32 %v451, 2147483648
        %v468 = vxor.u32 %v452, 2147483648
        %v469 = vxor.u32 %v453, 2147483648
        %v470 = vxor.u32 %v454, 2147483648
        %v471 = vxor.u32 %v455, 2147483648
        %v472 = vxor.u32 %v456, 2147483648
        %v473 = vxor.u32 %v457, 2147483648
        %v474 = vxor.u32 %v458, 2147483648
        %v475 = vxor.u32 %v459, 2147483648
        %v476 = vxor.u32 %v460, 2147483648
        %v477 = vxor.u32 %v461, 2147483648
        %v478 = vxor.u32 %v462, 2147483648
        %v479 = vmul.f32 %v463, 1.442695
        %v480 = vpow.pop %v479
        %v481 = vmul.f32 %v464, 1.442695
        %v482 = vpow.pop %v481
        %v483 = vmul.f32 %v465, 1.442695
        %v484 = vpow.pop %v483
        %v485 = vmul.f32 %v466, 1.442695
        %v486 = vpow.pop %v485
        %v487 = vmul.f32 %v467, 1.442695
        %v488 = vpow.pop %v487
        %v489 = vmul.f32 %v468, 1.442695
        %v490 = vpow.pop %v489
        %v491 = vmul.f32 %v469, 1.442695
        %v492 = vpow.pop %v491
        %v493 = vmul.f32 %v470, 1.442695
        %v494 = vpow.pop %v493
        %v495 = vmul.f32 %v471, 1.442695
        %v496 = vpow.pop %v495
        %v497 = vmul.f32 %v472, 1.442695
        %v498 = vpow.pop %v497
        %v499 = vmul.f32 %v473, 1.442695
        %v500 = vpow.pop %v499
        %v501 = vmul.f32 %v474, 1.442695
        %v502 = vpow.pop %v501
        %v503 = vmul.f32 %v475, 1.442695
        %v504 = vpow.pop %v503
        %v505 = vmul.f32 %v476, 1.442695
        %v506 = vpow.pop %v505
        %v507 = vmul.f32 %v477, 1.442695
        %v508 = vpow.pop %v507
        %v509 = vmul.f32 %v478, 1.442695
        %v510 = vpow.pop %v509
        %v511 = vadd.f32 %v480, 1.0
        %v512 = vadd.f32 %v482, 1.0
        %v513 = vadd.f32 %v484, 1.0
        %v514 = vadd.f32 %v486, 1.0
        %v515 = vadd.f32 %v488, 1.0
        %v516 = vadd.f32 %v490, 1.0
        %v517 = vadd.f32 %v492, 1.0
        %v518 = vadd.f32 %v494, 1.0
        %v519 = vadd.f32 %v496, 1.0
        %v520 = vadd.f32 %v498, 1.0
        %v521 = vadd.f32 %v500, 1.0
        %v522 = vadd.f32 %v502, 1.0
        %v523 = vadd.f32 %v504, 1.0
        %v524 = vadd.f32 %v506, 1.0
        %v525 = vadd.f32 %v508, 1.0
        %v526 = vadd.f32 %v510, 1.0
        %v527 = vrcp.pop %v511
        %v528 = vmul.f32 1.0, %v527
        %v529 = vrcp.pop %v512
        %v530 = vmul.f32 1.0, %v529
        %v531 = vrcp.pop %v513
        %v532 = vmul.f32 1.0, %v531
        %v533 = vrcp.pop %v514
        %v534 = vmul.f32 1.0, %v533
        %v535 = vrcp.pop %v515
        %v536 = vmul.f32 1.0, %v535
        %v537 = vrcp.pop %v516
        %v538 = vmul.f32 1.0, %v537
        %v539 = vrcp.pop %v517
        %v540 = vmul.f32 1.0, %v539
        %v541 = vrcp.pop %v518
        %v542 = vmul.f32 1.0, %v541
        %v543 = vrcp.pop %v519
        %v544 = vmul.f32 1.0, %v543
        %v545 = vrcp.pop %v520
        %v546 = vmul.f32 1.0, %v545
        %v547 = vrcp.pop %v521
        %v548 = vmul.f32 1.0, %v547
        %v549 = vrcp.pop %v522
        %v550 = vmul.f32 1.0, %v549
        %v551 = vrcp.pop %v523
        %v552 = vmul.f32 1.0, %v551
        %v553 = vrcp.pop %v524
        %v554 = vmul.f32 1.0, %v553
        %v555 = vrcp.pop %v525
        %v556 = vmul.f32 1.0, %v555
        %v557 = vrcp.pop %v526
        %v558 = vmul.f32 1.0, %v557
        %v559 = vsub.f32 1.0, %v289
        %v560 = vlaneseq
        %v561 = vshrl.u32 %v560, 7
        %v562 = vsub.s32 0, %v561
        %v563 = vrot.slane %v559, %v562
        %v564 = vmul.f32 %v528, %v563
        %v565 = vmul.f32 %v530, %v563
        %v566 = vmul.f32 %v532, %v563
        %v567 = vmul.f32 %v534, %v563
        %v568 = vmul.f32 %v536, %v563
        %v569 = vmul.f32 %v538, %v563
        %v570 = vmul.f32 %v540, %v563
        %v571 = vmul.f32 %v542, %v563
        %v572 = vmul.f32 %v544, %v563
        %v573 = vmul.f32 %v546, %v563
        %v574 = vmul.f32 %v548, %v563
        %v575 = vmul.f32 %v550, %v563
        %v576 = vmul.f32 %v552, %v563
        %v577 = vmul.f32 %v554, %v563
        %v578 = vmul.f32 %v556, %v563
        %v579 = vmul.f32 %v558, %v563
        %v580 = vlaneseq
        %v581 = vshrl.u32 %v580, 7
        %v582 = vsub.s32 0, %v581
        %v583 = vrot.slane %v289, %v582
        %v584 = vadd.f32 %v583, %v564
        %v585 = vadd.f32 %v583, %v565
        %v586 = vadd.f32 %v583, %v566
        %v587 = vadd.f32 %v583, %v567
        %v588 = vadd.f32 %v583, %v568
        %v589 = vadd.f32 %v583, %v569
        %v590 = vadd.f32 %v583, %v570
        %v591 = vadd.f32 %v583, %v571
        %v592 = vadd.f32 %v583, %v572
        %v593 = vadd.f32 %v583, %v573
        %v594 = vadd.f32 %v583, %v574
        %v595 = vadd.f32 %v583, %v575
        %v596 = vadd.f32 %v583, %v576
        %v597 = vadd.f32 %v583, %v577
        %v598 = vadd.f32 %v583, %v578
        %v599 = vadd.f32 %v583, %v579
        %v600 = vmul.f32 %v584, %v381
        %v601 = vmul.f32 %v585, %v384
        %v602 = vmul.f32 %v586, %v389
        %v603 = vmul.f32 %v587, %v392
        %v604 = vmul.f32 %v588, %v397
        %v605 = vmul.f32 %v589, %v400
        %v606 = vmul.f32 %v590, %v405
        %v607 = vmul.f32 %v591, %v408
        %v608 = vmul.f32 %v592, %v413
        %v609 = vmul.f32 %v593, %v416
        %v610 = vmul.f32 %v594, %v421
        %v611 = vmul.f32 %v595, %v424
        %v612 = vmul.f32 %v596, %v429
        %v613 = vmul.f32 %v597, %v432
        %v614 = vmul.f32 %v598, %v437
        %v615 = vmul.f32 %v599, %v440
        %v616 = vpack.c.bf16 %v601, %v600
        %v617 = vpack.c.bf16 %v603, %v602
        %v618 = vpack.c.bf16 %v605, %v604
        %v619 = vpack.c.bf16 %v607, %v606
        %v620 = vpack.c.bf16 %v609, %v608
        %v621 = vpack.c.bf16 %v611, %v610
        %v622 = vpack.c.bf16 %v613, %v612
        %v623 = vpack.c.bf16 %v615, %v614
        %v624 = vld [vmem:[#allocation7] sm:$0xf]
        %v625 = vld [vmem:[#allocation7 + $0x4] sm:$0xf]
        %v626 = vld [vmem:[#allocation7 + $0x8] sm:$0xf]
        %v627 = vld [vmem:[#allocation7 + $0xc] sm:$0xf]
        %v628 = vld [vmem:[#allocation7 + $0x10] sm:$0xf]
        %v629 = vld [vmem:[#allocation7 + $0x14] sm:$0xf]
        %v630 = vld [vmem:[#allocation7 + $0x18] sm:$0xf]
        %v631 = vld [vmem:[#allocation7 + $0x1c] sm:$0xf]
        %v632 = vld [vmem:[#allocation7 + $0x20] sm:$0xf]
        %v633 = vld [vmem:[#allocation7 + $0x24] sm:$0xf]
        %v634 = vld [vmem:[#allocation7 + $0x28] sm:$0xf]
        %v635 = vld [vmem:[#allocation7 + $0x2c] sm:$0xf]
        %v636 = vld [vmem:[#allocation7 + $0x30] sm:$0xf]
        %v637 = vld [vmem:[#allocation7 + $0x34] sm:$0xf]
        %v638 = vld [vmem:[#allocation7 + $0x38] sm:$0xf]
        %v639 = vld [vmem:[#allocation7 + $0x3c] sm:$0xf]
        %v640 = vlaneseq
        %v641 = vshrl.u32 %v640, 7
        %v642 = vsub.s32 0, %v641
        %v643 = vrot.slane %v291, %v642
        %v660 = vunpack.c.l.b16 %v624
        %v661 = vunpack.c.l.b16 %v625
        %v662 = vunpack.c.l.b16 %v626
        %v663 = vunpack.c.l.b16 %v627
        %v664 = vunpack.c.l.b16 %v628
        %v665 = vunpack.c.l.b16 %v629
        %v666 = vunpack.c.l.b16 %v630
        %v667 = vunpack.c.l.b16 %v631
        %v668 = vunpack.c.l.b16 %v632
        %v669 = vunpack.c.l.b16 %v633
        %v670 = vunpack.c.l.b16 %v634
        %v671 = vunpack.c.l.b16 %v635
        %v672 = vunpack.c.l.b16 %v636
        %v673 = vunpack.c.l.b16 %v637
        %v674 = vunpack.c.l.b16 %v638
        %v675 = vunpack.c.l.b16 %v639
        %v676 = vpack.c.b16 %v661, %v660
        %v677 = vpack.c.b16 %v663, %v662
        %v678 = vpack.c.b16 %v665, %v664
        %v679 = vpack.c.b16 %v667, %v666
        %v680 = vpack.c.b16 %v669, %v668
        %v681 = vpack.c.b16 %v671, %v670
        %v682 = vpack.c.b16 %v673, %v672
        %v683 = vpack.c.b16 %v675, %v674
        %692 = vmatprep.subr.bf16.mxu0 0
        %693 = vmatpush1.bf16.msra.mxu0 %v676
        %694 = vmatprep.subr.bf16.mxu0 0
        %695 = vmatpush1.bf16.msra.mxu0 %v677
        %696 = vmatprep.subr.bf16.mxu0 0
        %697 = vmatpush1.bf16.msra.mxu0 %v678
        %698 = vmatprep.subr.bf16.mxu0 0
        %699 = vmatpush1.bf16.msra.mxu0 %v679
        %700 = vmatprep.subr.bf16.mxu0 0
        %701 = vmatpush1.bf16.msra.mxu0 %v680
        %702 = vmatprep.subr.bf16.mxu0 0
        %703 = vmatpush1.bf16.msra.mxu0 %v681
        %704 = vmatprep.subr.bf16.mxu0 0
        %705 = vmatpush1.bf16.msra.mxu0 %v682
        %706 = vmatprep.subr.bf16.mxu0 0
        %707 = vmatpush1.bf16.msra.mxu0 %v683
        %708 = vmatprep.subr.bf16.mxu0 0
        %709 = vmatpush1.bf16.msra.mxu0 0
        %710 = vmatprep.subr.bf16.mxu0 0
        %711 = vmatpush1.bf16.msra.mxu0 0
        %712 = vmatprep.subr.bf16.mxu0 0
        %713 = vmatpush1.bf16.msra.mxu0 0
        %714 = vmatprep.subr.bf16.mxu0 0
        %715 = vmatpush1.bf16.msra.mxu0 0
        %716 = vmatprep.subr.bf16.mxu0 0
        %717 = vmatpush1.bf16.msra.mxu0 0
        %718 = vmatprep.subr.bf16.mxu0 0
        %719 = vmatpush1.bf16.msra.mxu0 0
        %720 = vmatprep.subr.bf16.mxu0 0
        %721 = vmatpush1.bf16.msra.mxu0 0
        %722 = vmatprep.subr.bf16.mxu0 0
        %723 = vmatpush1.bf16.msra.mxu0 0
        %724 = vmatprep.mubr.bf16.mxu0 0
        %725 = vmatmul.mubr.bf16.gmra.mrb[0].mxu0 %v616
        %v726 = vpop.f32.mrb[0].mxu0
        %v727 = vadd.f32 %v643, %v726
        %v728 = vpop.f32.mrb[0].mxu0
        %v729 = vpop.f32.mrb[0].mxu0
        %v730 = vadd.f32 %v643, %v729
        %v731 = vpop.f32.mrb[0].mxu0
        %732 = vmatprep.mubr.bf16.mxu0 0
        %733 = vmatmul.mubr.bf16.gmra.mrb[0].mxu0 %v617
        %v734 = vpop.f32.mrb[0].mxu0
        %v735 = vadd.f32 %v643, %v734
        %v736 = vpop.f32.mrb[0].mxu0
        %v737 = vpop.f32.mrb[0].mxu0
        %v738 = vadd.f32 %v643, %v737
        %v739 = vpop.f32.mrb[0].mxu0
        %740 = vmatprep.mubr.bf16.mxu0 0
        %741 = vmatmul.mubr.bf16.gmra.mrb[0].mxu0 %v618
        %v742 = vpop.f32.mrb[0].mxu0
        %v743 = vadd.f32 %v643, %v742
        %v744 = vpop.f32.mrb[0].mxu0
        %v745 = vpop.f32.mrb[0].mxu0
        %v746 = vadd.f32 %v643, %v745
        %v747 = vpop.f32.mrb[0].mxu0
        %748 = vmatprep.mubr.bf16.mxu0 0
        %749 = vmatmul.mubr.bf16.gmra.mrb[0].mxu0 %v619
        %v750 = vpop.f32.mrb[0].mxu0
        %v751 = vadd.f32 %v643, %v750
        %v752 = vpop.f32.mrb[0].mxu0
        %v753 = vpop.f32.mrb[0].mxu0
        %v754 = vadd.f32 %v643, %v753
        %v755 = vpop.f32.mrb[0].mxu0
        %756 = vmatprep.mubr.bf16.mxu0 0
        %757 = vmatmul.mubr.bf16.gmra.mrb[0].mxu0 %v620
        %v758 = vpop.f32.mrb[0].mxu0
        %v759 = vadd.f32 %v643, %v758
        %v760 = vpop.f32.mrb[0].mxu0
        %v761 = vpop.f32.mrb[0].mxu0
        %v762 = vadd.f32 %v643, %v761
        %v763 = vpop.f32.mrb[0].mxu0
        %764 = vmatprep.mubr.bf16.mxu0 0
        %765 = vmatmul.mubr.bf16.gmra.mrb[0].mxu0 %v621
        %v766 = vpop.f32.mrb[0].mxu0
        %v767 = vadd.f32 %v643, %v766
        %v768 = vpop.f32.mrb[0].mxu0
        %v769 = vpop.f32.mrb[0].mxu0
        %v770 = vadd.f32 %v643, %v769
        %v771 = vpop.f32.mrb[0].mxu0
        %772 = vmatprep.mubr.bf16.mxu0 0
        %773 = vmatmul.mubr.bf16.gmra.mrb[0].mxu0 %v622
        %v774 = vpop.f32.mrb[0].mxu0
        %v775 = vadd.f32 %v643, %v774
        %v776 = vpop.f32.mrb[0].mxu0
        %v777 = vpop.f32.mrb[0].mxu0
        %v778 = vadd.f32 %v643, %v777
        %v779 = vpop.f32.mrb[0].mxu0
        %780 = vmatprep.mubr.bf16.mxu0 0
        %781 = vmatmul.mubr.bf16.gmra.mrb[0].mxu0 %v623
        %v782 = vpop.f32.mrb[0].mxu0
        %v783 = vadd.f32 %v643, %v782
        %v784 = vpop.f32.mrb[0].mxu0
        %v785 = vpop.f32.mrb[0].mxu0
        %v786 = vadd.f32 %v643, %v785
        %v787 = vpop.f32.mrb[0].mxu0
        %788 = vdwg.mxu0
        %v789 = vlaneseq
        %v790 = vshrl.u32 %v789, 7
        %v791 = vsub.s32 0, %v790
        %v792 = vrot.slane %v293, %v791
        %v793 = vmul.f32 %v792, %v727
        %v794 = vmul.f32 %v792, %v730
        %v795 = vmul.f32 %v792, %v735
        %v796 = vmul.f32 %v792, %v738
        %v797 = vmul.f32 %v792, %v743
        %v798 = vmul.f32 %v792, %v746
        %v799 = vmul.f32 %v792, %v751
        %v800 = vmul.f32 %v792, %v754
        %v801 = vmul.f32 %v792, %v759
        %v802 = vmul.f32 %v792, %v762
        %v803 = vmul.f32 %v792, %v767
        %v804 = vmul.f32 %v792, %v770
        %v805 = vmul.f32 %v792, %v775
        %v806 = vmul.f32 %v792, %v778
        %v807 = vmul.f32 %v792, %v783
        %v808 = vmul.f32 %v792, %v786
        %v809 = vxor.u32 %v793, 2147483648
        %v810 = vxor.u32 %v794, 2147483648
        %v811 = vxor.u32 %v795, 2147483648
        %v812 = vxor.u32 %v796, 2147483648
        %v813 = vxor.u32 %v797, 2147483648
        %v814 = vxor.u32 %v798, 2147483648
        %v815 = vxor.u32 %v799, 2147483648
        %v816 = vxor.u32 %v800, 2147483648
        %v817 = vxor.u32 %v801, 2147483648
        %v818 = vxor.u32 %v802, 2147483648
        %v819 = vxor.u32 %v803, 2147483648
        %v820 = vxor.u32 %v804, 2147483648
        %v821 = vxor.u32 %v805, 2147483648
        %v822 = vxor.u32 %v806, 2147483648
        %v823 = vxor.u32 %v807, 2147483648
        %v824 = vxor.u32 %v808, 2147483648
        %v825 = vmul.f32 %v809, 1.442695
        %v826 = vpow.pop %v825
        %v827 = vmul.f32 %v810, 1.442695
        %v828 = vpow.pop %v827
        %v829 = vmul.f32 %v811, 1.442695
        %v830 = vpow.pop %v829
        %v831 = vmul.f32 %v812, 1.442695
        %v832 = vpow.pop %v831
        %v833 = vmul.f32 %v813, 1.442695
        %v834 = vpow.pop %v833
        %v835 = vmul.f32 %v814, 1.442695
        %v836 = vpow.pop %v835
        %v837 = vmul.f32 %v815, 1.442695
        %v838 = vpow.pop %v837
        %v839 = vmul.f32 %v816, 1.442695
        %v840 = vpow.pop %v839
        %v841 = vmul.f32 %v817, 1.442695
        %v842 = vpow.pop %v841
        %v843 = vmul.f32 %v818, 1.442695
        %v844 = vpow.pop %v843
        %v845 = vmul.f32 %v819, 1.442695
        %v846 = vpow.pop %v845
        %v847 = vmul.f32 %v820, 1.442695
        %v848 = vpow.pop %v847
        %v849 = vmul.f32 %v821, 1.442695
        %v850 = vpow.pop %v849
        %v851 = vmul.f32 %v822, 1.442695
        %v852 = vpow.pop %v851
        %v853 = vmul.f32 %v823, 1.442695
        %v854 = vpow.pop %v853
        %v855 = vmul.f32 %v824, 1.442695
        %v856 = vpow.pop %v855
        %v857 = vadd.f32 %v826, 1.0
        %v858 = vadd.f32 %v828, 1.0
        %v859 = vadd.f32 %v830, 1.0
        %v860 = vadd.f32 %v832, 1.0
        %v861 = vadd.f32 %v834, 1.0
        %v862 = vadd.f32 %v836, 1.0
        %v863 = vadd.f32 %v838, 1.0
        %v864 = vadd.f32 %v840, 1.0
        %v865 = vadd.f32 %v842, 1.0
        %v866 = vadd.f32 %v844, 1.0
        %v867 = vadd.f32 %v846, 1.0
        %v868 = vadd.f32 %v848, 1.0
        %v869 = vadd.f32 %v850, 1.0
        %v870 = vadd.f32 %v852, 1.0
        %v871 = vadd.f32 %v854, 1.0
        %v872 = vadd.f32 %v856, 1.0
        %v873 = vrcp.pop %v857
        %v874 = vmul.f32 1.0, %v873
        %v875 = vrcp.pop %v858
        %v876 = vmul.f32 1.0, %v875
        %v877 = vrcp.pop %v859
        %v878 = vmul.f32 1.0, %v877
        %v879 = vrcp.pop %v860
        %v880 = vmul.f32 1.0, %v879
        %v881 = vrcp.pop %v861
        %v882 = vmul.f32 1.0, %v881
        %v883 = vrcp.pop %v862
        %v884 = vmul.f32 1.0, %v883
        %v885 = vrcp.pop %v863
        %v886 = vmul.f32 1.0, %v885
        %v887 = vrcp.pop %v864
        %v888 = vmul.f32 1.0, %v887
        %v889 = vrcp.pop %v865
        %v890 = vmul.f32 1.0, %v889
        %v891 = vrcp.pop %v866
        %v892 = vmul.f32 1.0, %v891
        %v893 = vrcp.pop %v867
        %v894 = vmul.f32 1.0, %v893
        %v895 = vrcp.pop %v868
        %v896 = vmul.f32 1.0, %v895
        %v897 = vrcp.pop %v869
        %v898 = vmul.f32 1.0, %v897
        %v899 = vrcp.pop %v870
        %v900 = vmul.f32 1.0, %v899
        %v901 = vrcp.pop %v871
        %v902 = vmul.f32 1.0, %v901
        %v903 = vrcp.pop %v872
        %v904 = vmul.f32 1.0, %v903
        %v905 = vsub.f32 1.0, %v292
        %v906 = vlaneseq
        %v907 = vshrl.u32 %v906, 7
        %v908 = vsub.s32 0, %v907
        %v909 = vrot.slane %v905, %v908
        %v910 = vmul.f32 %v874, %v909
        %v911 = vmul.f32 %v876, %v909
        %v912 = vmul.f32 %v878, %v909
        %v913 = vmul.f32 %v880, %v909
        %v914 = vmul.f32 %v882, %v909
        %v915 = vmul.f32 %v884, %v909
        %v916 = vmul.f32 %v886, %v909
        %v917 = vmul.f32 %v888, %v909
        %v918 = vmul.f32 %v890, %v909
        %v919 = vmul.f32 %v892, %v909
        %v920 = vmul.f32 %v894, %v909
        %v921 = vmul.f32 %v896, %v909
        %v922 = vmul.f32 %v898, %v909
        %v923 = vmul.f32 %v900, %v909
        %v924 = vmul.f32 %v902, %v909
        %v925 = vmul.f32 %v904, %v909
        %v926 = vlaneseq
        %v927 = vshrl.u32 %v926, 7
        %v928 = vsub.s32 0, %v927
        %v929 = vrot.slane %v292, %v928
        %v930 = vadd.f32 %v929, %v910
        %v931 = vadd.f32 %v929, %v911
        %v932 = vadd.f32 %v929, %v912
        %v933 = vadd.f32 %v929, %v913
        %v934 = vadd.f32 %v929, %v914
        %v935 = vadd.f32 %v929, %v915
        %v936 = vadd.f32 %v929, %v916
        %v937 = vadd.f32 %v929, %v917
        %v938 = vadd.f32 %v929, %v918
        %v939 = vadd.f32 %v929, %v919
        %v940 = vadd.f32 %v929, %v920
        %v941 = vadd.f32 %v929, %v921
        %v942 = vadd.f32 %v929, %v922
        %v943 = vadd.f32 %v929, %v923
        %v944 = vadd.f32 %v929, %v924
        %v945 = vadd.f32 %v929, %v925
        %v946 = vmul.f32 %v930, %v727
        %v947 = vmul.f32 %v931, %v730
        %v948 = vmul.f32 %v932, %v735
        %v949 = vmul.f32 %v933, %v738
        %v950 = vmul.f32 %v934, %v743
        %v951 = vmul.f32 %v935, %v746
        %v952 = vmul.f32 %v936, %v751
        %v953 = vmul.f32 %v937, %v754
        %v954 = vmul.f32 %v938, %v759
        %v955 = vmul.f32 %v939, %v762
        %v956 = vmul.f32 %v940, %v767
        %v957 = vmul.f32 %v941, %v770
        %v958 = vmul.f32 %v942, %v775
        %v959 = vmul.f32 %v943, %v778
        %v960 = vmul.f32 %v944, %v783
        %v961 = vmul.f32 %v945, %v786
        %v962 = vadd.f32 %v946, %v248
        %v963 = vadd.f32 %v947, %v249
        %v964 = vadd.f32 %v948, %v250
        %v965 = vadd.f32 %v949, %v251
        %v966 = vadd.f32 %v950, %v252
        %v967 = vadd.f32 %v951, %v253
        %v968 = vadd.f32 %v952, %v254
        %v969 = vadd.f32 %v953, %v255
        %v970 = vadd.f32 %v954, %v256
        %v971 = vadd.f32 %v955, %v257
        %v972 = vadd.f32 %v956, %v258
        %v973 = vadd.f32 %v957, %v259
        %v974 = vadd.f32 %v958, %v260
        %v975 = vadd.f32 %v959, %v261
        %v976 = vadd.f32 %v960, %v262
        %v977 = vadd.f32 %v961, %v263
        %978 = vst [vmem:[%s244] sm:$0xff] %v962
        %979 = vst [vmem:[%s244 + $0x8] sm:$0xff] %v963
        %980 = vst [vmem:[%s244 + $0x10] sm:$0xff] %v964
        %981 = vst [vmem:[%s244 + $0x18] sm:$0xff] %v965
        %982 = vst [vmem:[%s244 + $0x20] sm:$0xff] %v966
        %983 = vst [vmem:[%s244 + $0x28] sm:$0xff] %v967
        %984 = vst [vmem:[%s244 + $0x30] sm:$0xff] %v968
        %985 = vst [vmem:[%s244 + $0x38] sm:$0xff] %v969
        %986 = vst [vmem:[%s244 + $0x40] sm:$0xff] %v970
        %987 = vst [vmem:[%s244 + $0x48] sm:$0xff] %v971
        %988 = vst [vmem:[%s244 + $0x50] sm:$0xff] %v972
        %989 = vst [vmem:[%s244 + $0x58] sm:$0xff] %v973
        %990 = vst [vmem:[%s244 + $0x60] sm:$0xff] %v974
        %991 = vst [vmem:[%s244 + $0x68] sm:$0xff] %v975
        %992 = vst [vmem:[%s244 + $0x70] sm:$0xff] %v976
        %993 = vst [vmem:[%s244 + $0x78] sm:$0xff] %v977
        %s994 = sand.u32 %s119, 1
        %s995 = scalar_lea.sflag [#allocation4], %s994
        %s996 = sand.u32 %s119, 1
        %s997 = smul.addr %s996, 128
        %s998 = scalar_lea.vmem [#allocation8], %s997
        // Predicated region
        $region49: #{resblock_forward.1} parent=35 // pred_check
          %p999 = pneg %p129
        $region50: #{resblock_forward.1} parent=35 // pred_check_branch
          %1001 = sbr.rel (%p999) target = $region52
        $region51: #{resblock_forward.1} parent=35 // pred_region
          %s1002 = smul.u32 16, %s22
          %s1004 = ssub.s32 2048, 2048
          %1005 = vsyncadd %s995, %s1004
          %s1006 = smul.addr %s1002, 128
          %s1007 = scalar_lea.hbm %s4, %s1006
          %s1008 = sshll.u32 %s998, 4
          %s1009 = int_to_ptr.vmem [resolvable:$true] %s1008
          %1014 = dma.vmem_to_hbm [thread:$0]  %s1009, 2048, %s1007, %s995, 128, 128, 8
        $region52: #{resblock_forward.1} parent=35 // pred_fallthru
          _
      $region36: #{resblock_forward.1} parent=5 // pred_fallthru
        _
      %p1015 = scmp.le.s32.totalorder 2, %s17
      // Predicated region
      $region53: #{resblock_forward.1} parent=5 // pred_check
        %p1016 = pneg %p1015
      $region54: #{resblock_forward.1} parent=5 // pred_check_branch
        %1018 = sbr.rel (%p1016) target = $region56
      $region55: #{resblock_forward.1} parent=5 // pred_region
        %s1019 = ssub.s32 %s17, 2
        // Predicated region
        $region57: #{resblock_forward.1} parent=55 // pred_check
          %p1020 = pneg %p135
        $region58: #{resblock_forward.1} parent=55 // pred_check_branch
          %1022 = sbr.rel (%p1020) target = $region60
        $region59: #{resblock_forward.1} parent=55 // pred_region
          %s1023 = sand.u32 %s120, 1
          %s1024 = scalar_lea.sflag [#allocation4], %s1023
          %s1025 = sand.u32 %s120, 1
          %s1026 = smul.addr %s1025, 128
          %s1027 = scalar_lea.vmem [#allocation8], %s1026
          %1028 = dma.done %s1024, 2048
        $region60: #{resblock_forward.1} parent=55 // pred_fallthru
          _
      $region56: #{resblock_forward.1} parent=5 // pred_fallthru
        _
    $region6: #{resblock_forward.1} parent=1 // loop_footer
      %s21 = sadd.s32 1, %s17
    $region7: #{resblock_forward.1} parent=1 // loop_footer_branch
      %16 = sbr.rel target = $region3
    $region8: #{resblock_forward.1} parent=1 // loop_exit
      _
    %1029 = vsyncpa [#allocation3], 1
    %s1030 = scalar_lea.sflag [#allocation3], 1
    %1031 = vsyncpa %s1030, 1
    %1032 = vsyncpa [#allocation6], 1
    %1033 = vsyncpa [#allocation4], 1
    %s1034 = scalar_lea.sflag [#allocation4], 1
    %1035 = vsyncpa %s1034, 1

</llo_original>
